<compile_context>
chip_gen: v6e
topology: v6e:2x2x1
jax: 0.10.0
libtpu: 0.0.40
codegen_flags: <defaults>
</compile_context>

<pallas_src>
import jax
import jax.numpy as jnp
from jax import lax
from jax.experimental import pallas as pl
from jax.experimental.pallas import tpu as pltpu


def _round_up(x, m):
    return (x + m - 1) // m * m


def _leaky_relu(x, slope=0.2):
    return jnp.where(x > 0, x, slope * x)


def discriminator_kernel(x_ref, w1_ref, b1_ref, w2_ref, b2_ref, w3_ref, b3_ref,
                         o_ref):
    # x arrives f32 (half the HBM bytes of a pre-materialized bf16 padded copy)
    # and is cast to bf16 in VMEM for the MXU.
    x = x_ref[...].astype(jnp.bfloat16)

    # Layer 1: (TB, D) @ (D, 512), bf16 operands, f32 accumulation.
    h1 = jnp.dot(x, w1_ref[...], preferred_element_type=jnp.float32)
    h1 = _leaky_relu(h1 + b1_ref[...])

    # Layer 2: (TB, 512) @ (512, 256), bf16 operands, f32 accumulation.
    h2 = jnp.dot(h1.astype(jnp.bfloat16), w2_ref[...],
                 preferred_element_type=jnp.float32)
    h2 = _leaky_relu(h2 + b2_ref[...])

    # Layer 3 (256 -> 1): (1, 256) x (TB, 256)^T -> (1, TB).  The logits come
    # out lane-dense, so the (1, TB) output block is an unmasked, contiguous
    # store.  Kept in f32 to preserve the final layer's numerics; the MXU has
    # huge slack here.
    logit = lax.dot_general(w3_ref[...], h2, (((1,), (1,)), ((), ())),
                            preferred_element_type=jnp.float32)
    o_ref[...] = jax.nn.sigmoid(logit + b3_ref[...])


def _pick_batch_tile(B, tb_max):
    """Large tiles amortize per-step overhead (measured: 512-1024-wide tiles
    reach ~85%+ of HBM roofline).  Keep >= 2 grid steps for moderate/large B so
    v7x's two TensorCores both get work, and keep TB 128-aligned so the
    lane-dense (1, TB) output block stays legal when the grid has > 1 step."""
    if B <= 128:
        return _round_up(max(B, 1), 16)            # single step; block == full array
    return max(128, min(tb_max, _round_up(pl.cdiv(B, 2), 128)))


def _vmem_limit_bytes(tb, D, H1, H2):
    """Scoped-VMEM budget from the actual buffer inventory, generation-aware."""
    resident = (D * H1 + H1 * H2) * 2 + (H1 + 2 * H2 + 1) * 4   # single-buffered weights/biases
    streamed = 2 * tb * D * 4 + 2 * tb * 4                      # double-buffered f32 x + out tiles
    temps = tb * D * 2 + tb * H1 * 6 + tb * H2 * 4              # bf16 x, f32+bf16 h1, f32 h2
    budget = int(1.3 * (resident + streamed + temps)) + (2 << 20)  # compiler scratch headroom

    phys = 64 << 20                                             # safe default (v7x per-TC VMEM)
    try:
        info = pltpu.get_tpu_info()
        phys = int(getattr(info, "vmem_capacity_bytes", phys)) or phys
    except Exception:
        pass
    # ~54 MiB cap on v7x (64 MiB physical), up to ~100 MiB on v5e/v6e (128 MiB).
    cap = min(int(phys * 0.85), 100 << 20)
    return max(32 << 20, min(cap, budget))


def discriminator_forward(img, params, *, tb_max=1024):
    """img: (B, C, H, W) float32; params: dict of (in,out) weights + (1,out) biases."""
    B = img.shape[0]
    x = img.reshape(B, -1).astype(jnp.float32)        # flatten (glue reshape in JAX)
    D = x.shape[1]
    H1 = params["w1"].shape[1]                        # 512
    H2 = params["w2"].shape[1]                        # 256

    tb = _pick_batch_tile(B, tb_max)
    b_pad = _round_up(B, tb)
    if b_pad != B:                                    # pad only when ragged
        x = jnp.pad(x, ((0, b_pad - B), (0, 0)))

    # Resident matmul weights in bf16 (halves VMEM residency); everything else f32.
    w1 = params["w1"].astype(jnp.bfloat16)            # (D, 512)
    w2 = params["w2"].astype(jnp.bfloat16)            # (512, 256)
    b1 = params["b1"].astype(jnp.float32)             # (1, 512)
    b2 = params["b2"].astype(jnp.float32)             # (1, 256)
    w3_row = params["w3"].reshape(1, H2).astype(jnp.float32)   # (1, 256) lane-dense
    b3 = params["b3"].reshape(1, 1).astype(jnp.float32)        # (1, 1)

    grid = (b_pad // tb,)
    const = lambda i: (0, 0)
    resident = pl.Buffered(1)      # constant index_map -> single buffer is enough

    flops = 2 * b_pad * (D * H1 + H1 * H2 + H2)
    bytes_accessed = (b_pad * D * 4 + (D * H1 + H1 * H2) * 2
                      + (H1 + 2 * H2 + 1) * 4 + b_pad * 4)

    out_p = pl.pallas_call(
        discriminator_kernel,
        out_shape=jax.ShapeDtypeStruct((1, b_pad), jnp.float32),   # lane-dense output
        grid=grid,
        in_specs=[
            # x streams over batch, double-buffered by default.  If an xprof
            # trace shows exposed DMA waits at large TB, sweep pl.Buffered(3)
            # here (gate on the v7x VMEM budget).
            pl.BlockSpec((tb, D), lambda i: (i, 0)),
            pl.BlockSpec((D, H1), const, pipeline_mode=resident),   # w1 resident
            pl.BlockSpec((1, H1), const, pipeline_mode=resident),   # b1
            pl.BlockSpec((H1, H2), const, pipeline_mode=resident),  # w2 resident
            pl.BlockSpec((1, H2), const, pipeline_mode=resident),   # b2
            pl.BlockSpec((1, H2), const, pipeline_mode=resident),   # w3 (row form)
            pl.BlockSpec((1, 1), const, pipeline_mode=resident),    # b3
        ],
        out_specs=pl.BlockSpec((1, tb), lambda i: (0, i)),
        compiler_params=pltpu.CompilerParams(
            dimension_semantics=("parallel",),                      # megacore on v7x
            vmem_limit_bytes=_vmem_limit_bytes(tb, D, H1, H2)),
        cost_estimate=pl.CostEstimate(
            flops=flops,
            transcendentals=2 * b_pad,            # sigmoid ~ exp + reciprocal per output
            bytes_accessed=bytes_accessed),
    )(x, w1, b1, w2, b2, w3_row, b3)

    return out_p[0, :B].reshape(B, 1)


def init_params(key, in_dim, h1=512, h2=256, out_dim=1):
    """Deterministic synthetic weights (PyTorch-Linear-style uniform init)."""
    ks = jax.random.split(key, 6)

    def lin(kw, kb, fan_in, fan_out):
        bound = 1.0 / jnp.sqrt(fan_in)
        w = jax.random.uniform(kw, (fan_in, fan_out), jnp.float32, -bound, bound)
        b = jax.random.uniform(kb, (1, fan_out), jnp.float32, -bound, bound)
        return w, b

    w1, b1 = lin(ks[0], ks[1], in_dim, h1)
    w2, b2 = lin(ks[2], ks[3], h1, h2)
    w3, b3 = lin(ks[4], ks[5], h2, out_dim)
    return dict(w1=w1, b1=b1, w2=w2, b2=b2, w3=w3, b3=b3)


def _reference_forward_f32(img, p):
    """PyTorch-semantics reference, full f32."""
    x = img.reshape(img.shape[0], -1)
    h1 = x @ p["w1"] + p["b1"]
    h1 = jnp.where(h1 > 0, h1, 0.2 * h1)
    h2 = h1 @ p["w2"] + p["b2"]
    h2 = jnp.where(h2 > 0, h2, 0.2 * h2)
    return jax.nn.sigmoid(h2 @ p["w3"] + p["b3"])


def _reference_forward_matched(img, p):
    """Same math with the kernel's bf16-operand / f32-accumulate precision policy."""
    x = img.reshape(img.shape[0], -1).astype(jnp.bfloat16)
    h1 = jnp.dot(x, p["w1"].astype(jnp.bfloat16),
                 preferred_element_type=jnp.float32) + p["b1"]
    h1 = jnp.where(h1 > 0, h1, 0.2 * h1)
    h2 = jnp.dot(h1.astype(jnp.bfloat16), p["w2"].astype(jnp.bfloat16),
                 preferred_element_type=jnp.float32) + p["b2"]
    h2 = jnp.where(h2 > 0, h2, 0.2 * h2)
    return jax.nn.sigmoid(h2 @ p["w3"] + p["b3"])          # final layer stays f32


if __name__ == "__main__":
    # opt.img_size = 16, single channel -> D = 256; batch = 2
    B, C, H, W = 2, 1, 16, 16
    key = jax.random.PRNGKey(0)
    k_img, k_par = jax.random.split(key)

    img = jax.random.normal(k_img, (B, C, H, W), dtype=jnp.float32)
    params = init_params(k_par, in_dim=C * H * W)

    out = jax.block_until_ready(discriminator_forward(img, params))
    assert out.shape == (B, 1), out.shape

    # Exactness at matched (bf16 operand, f32 accumulate) precision.
    ref_matched = _reference_forward_matched(img, params)
    assert jnp.allclose(out, ref_matched, atol=1e-3, rtol=1e-3), (out, ref_matched)
    # Agreement with the full-f32 PyTorch-semantics reference (bf16 policy drift).
    ref_f32 = _reference_forward_f32(img, params)
    assert jnp.allclose(out, ref_f32, atol=2e-2, rtol=2e-2), (out, ref_f32)

    print("KERNEL_OK")
</pallas_src>

<mosaic_0001>
module attributes {stable_mosaic.version = 11 : i64} {
  func.func @discriminator_kernel(%arg0: i32, %arg1: memref<16x256xf32, #tpu.memory_space<vmem>>, %arg2: memref<256x512xbf16, #tpu.memory_space<vmem>>, %arg3: memref<1x512xf32, #tpu.memory_space<vmem>>, %arg4: memref<512x256xbf16, #tpu.memory_space<vmem>>, %arg5: memref<1x256xf32, #tpu.memory_space<vmem>>, %arg6: memref<1x256xf32, #tpu.memory_space<vmem>>, %arg7: memref<1x1xf32, #tpu.memory_space<vmem>>, %arg8: memref<1x16xf32, #tpu.memory_space<vmem>>) attributes {dimension_semantics = [#tpu.dimension_semantics<parallel>], iteration_bounds = array<i64: 1>, scalar_prefetch = 0 : i64, scratch_operands = 0 : i64, tpu.core_type = #tpu.core_type<tc>, window_params = [{transform_indices = @transform_0, window_bounds = array<i64: 16, 256>}, {pipeline_mode = #tpu.pipeline_mode<synchronous>, transform_indices = @transform_1, window_bounds = array<i64: 256, 512>}, {pipeline_mode = #tpu.pipeline_mode<synchronous>, transform_indices = @transform_2, window_bounds = array<i64: 1, 512>}, {pipeline_mode = #tpu.pipeline_mode<synchronous>, transform_indices = @transform_3, window_bounds = array<i64: 512, 256>}, {pipeline_mode = #tpu.pipeline_mode<synchronous>, transform_indices = @transform_4, window_bounds = array<i64: 1, 256>}, {pipeline_mode = #tpu.pipeline_mode<synchronous>, transform_indices = @transform_5, window_bounds = array<i64: 1, 256>}, {pipeline_mode = #tpu.pipeline_mode<synchronous>, transform_indices = @transform_6, window_bounds = array<i64: 1, 1>}, {transform_indices = @transform_7, window_bounds = array<i64: 1, 16>}]} {
    %c0 = arith.constant 0 : index
    %c0_0 = arith.constant 0 : index
    %0 = vector.load %arg1[%c0, %c0_0] : memref<16x256xf32, #tpu.memory_space<vmem>>, vector<16x256xf32>
    %1 = arith.truncf %0 : vector<16x256xf32> to vector<16x256xbf16>
    %c0_1 = arith.constant 0 : index
    %c0_2 = arith.constant 0 : index
    %2 = vector.load %arg2[%c0_1, %c0_2] : memref<256x512xbf16, #tpu.memory_space<vmem>>, vector<256x512xbf16>
    %cst = arith.constant dense<0.000000e+00> : vector<16x512xf32>
    %3 = tpu.matmul %1, %2, %cst {dimension_numbers = #tpu.dot_dimension_numbers<[1], [0], [0], [1], [0, 0, 1, 1], [], []>} : vector<16x256xbf16>, vector<256x512xbf16>, vector<16x512xf32> -> vector<16x512xf32>
    %c0_3 = arith.constant 0 : index
    %c0_4 = arith.constant 0 : index
    %4 = vector.load %arg3[%c0_3, %c0_4] : memref<1x512xf32, #tpu.memory_space<vmem>>, vector<1x512xf32>
    %5 = vector.broadcast %4 : vector<1x512xf32> to vector<16x512xf32>
    %6 = arith.addf %3, %5 : vector<16x512xf32>
    %cst_5 = arith.constant 0.000000e+00 : f32
    %7 = vector.broadcast %cst_5 : f32 to vector<16x512xf32>
    %8 = arith.cmpf ogt, %6, %7 : vector<16x512xf32>
    %cst_6 = arith.constant 2.000000e-01 : f32
    %9 = vector.broadcast %cst_6 : f32 to vector<16x512xf32>
    %10 = arith.mulf %9, %6 : vector<16x512xf32>
    %11 = arith.select %8, %6, %10 : vector<16x512xi1>, vector<16x512xf32>
    %12 = arith.truncf %11 : vector<16x512xf32> to vector<16x512xbf16>
    %c0_7 = arith.constant 0 : index
    %c0_8 = arith.constant 0 : index
    %13 = vector.load %arg4[%c0_7, %c0_8] : memref<512x256xbf16, #tpu.memory_space<vmem>>, vector<512x256xbf16>
    %cst_9 = arith.constant dense<0.000000e+00> : vector<16x256xf32>
    %14 = tpu.matmul %12, %13, %cst_9 {dimension_numbers = #tpu.dot_dimension_numbers<[1], [0], [0], [1], [0, 0, 1, 1], [], []>} : vector<16x512xbf16>, vector<512x256xbf16>, vector<16x256xf32> -> vector<16x256xf32>
    %c0_10 = arith.constant 0 : index
    %c0_11 = arith.constant 0 : index
    %15 = vector.load %arg5[%c0_10, %c0_11] : memref<1x256xf32, #tpu.memory_space<vmem>>, vector<1x256xf32>
    %16 = vector.broadcast %15 : vector<1x256xf32> to vector<16x256xf32>
    %17 = arith.addf %14, %16 : vector<16x256xf32>
    %cst_12 = arith.constant 0.000000e+00 : f32
    %18 = vector.broadcast %cst_12 : f32 to vector<16x256xf32>
    %19 = arith.cmpf ogt, %17, %18 : vector<16x256xf32>
    %cst_13 = arith.constant 2.000000e-01 : f32
    %20 = vector.broadcast %cst_13 : f32 to vector<16x256xf32>
    %21 = arith.mulf %20, %17 : vector<16x256xf32>
    %22 = arith.select %19, %17, %21 : vector<16x256xi1>, vector<16x256xf32>
    %c0_14 = arith.constant 0 : index
    %c0_15 = arith.constant 0 : index
    %23 = vector.load %arg6[%c0_14, %c0_15] : memref<1x256xf32, #tpu.memory_space<vmem>>, vector<1x256xf32>
    %cst_16 = arith.constant dense<0.000000e+00> : vector<1x16xf32>
    %24 = tpu.matmul %23, %22, %cst_16 {dimension_numbers = #tpu.dot_dimension_numbers<[1], [1], [0], [0], [0, 0, 1, 0], [], []>} : vector<1x256xf32>, vector<16x256xf32>, vector<1x16xf32> -> vector<1x16xf32>
    %c0_17 = arith.constant 0 : index
    %c0_18 = arith.constant 0 : index
    %25 = vector.load %arg7[%c0_17, %c0_18] : memref<1x1xf32, #tpu.memory_space<vmem>>, vector<1x1xf32>
    %26 = vector.broadcast %25 : vector<1x1xf32> to vector<1x16xf32>
    %27 = arith.addf %24, %26 : vector<1x16xf32>
    %28 = arith.negf %27 : vector<1x16xf32>
    %29 = math.exp %28 : vector<1x16xf32>
    %cst_19 = arith.constant 1.000000e+00 : f32
    %30 = vector.broadcast %cst_19 : f32 to vector<1x16xf32>
    %31 = arith.addf %30, %29 : vector<1x16xf32>
    %32 = arith.divf %30, %31 : vector<1x16xf32>
    %c0_20 = arith.constant 0 : index
    %c0_21 = arith.constant 0 : index
    %33 = vector.load %arg8[%c0_20, %c0_21] : memref<1x16xf32, #tpu.memory_space<vmem>>, vector<1x16xf32>
    tpu.vector_store %arg8[%c0_20, %c0_21], %32 {strides = array<i32>} : memref<1x16xf32, #tpu.memory_space<vmem>>, vector<1x16xf32>,
    return
  }
  func.func @transform_0(%arg0: i32) -> (i32, i32) {
    %c0_i32 = arith.constant 0 : i32
    %c0_i32_0 = arith.constant 0 : i32
    return %arg0, %c0_i32 : i32, i32
  }
  func.func @transform_1(%arg0: i32) -> (i32, i32) {
    %c0_i32 = arith.constant 0 : i32
    %c0_i32_0 = arith.constant 0 : i32
    %c0_i32_1 = arith.constant 0 : i32
    return %c0_i32, %c0_i32_0 : i32, i32
  }
  func.func @transform_2(%arg0: i32) -> (i32, i32) {
    %c0_i32 = arith.constant 0 : i32
    %c0_i32_0 = arith.constant 0 : i32
    %c0_i32_1 = arith.constant 0 : i32
    return %c0_i32, %c0_i32_0 : i32, i32
  }
  func.func @transform_3(%arg0: i32) -> (i32, i32) {
    %c0_i32 = arith.constant 0 : i32
    %c0_i32_0 = arith.constant 0 : i32
    %c0_i32_1 = arith.constant 0 : i32
    return %c0_i32, %c0_i32_0 : i32, i32
  }
  func.func @transform_4(%arg0: i32) -> (i32, i32) {
    %c0_i32 = arith.constant 0 : i32
    %c0_i32_0 = arith.constant 0 : i32
    %c0_i32_1 = arith.constant 0 : i32
    return %c0_i32, %c0_i32_0 : i32, i32
  }
  func.func @transform_5(%arg0: i32) -> (i32, i32) {
    %c0_i32 = arith.constant 0 : i32
    %c0_i32_0 = arith.constant 0 : i32
    %c0_i32_1 = arith.constant 0 : i32
    return %c0_i32, %c0_i32_0 : i32, i32
  }
  func.func @transform_6(%arg0: i32) -> (i32, i32) {
    %c0_i32 = arith.constant 0 : i32
    %c0_i32_0 = arith.constant 0 : i32
    %c0_i32_1 = arith.constant 0 : i32
    return %c0_i32, %c0_i32_0 : i32, i32
  }
  func.func @transform_7(%arg0: i32) -> (i32, i32) {
    %c0_i32 = arith.constant 0 : i32
    %c0_i32_0 = arith.constant 0 : i32
    return %c0_i32, %arg0 : i32, i32
  }
}

</mosaic_0001>

<llo_original>
// kernel: tpu_custom_call.1
$region0: #{tpu_custom_call.1}
  #allocation0 [shape = 'u32[]', space=smem, size = 0x4, offset = 0x4, fixed_abs, tag = 'smem constant byte address 0x4 - core index']
  #allocation1 [shape = 'u32[144,128]{1,0:T(1,128)}', space=vmem, size = 0x12000, scoped, tag = 'internal scratch']
  #allocation2 [shape = 'f32[1,1]{1,0:T(1,128)S(1)}', space=vmem, size = 0x200, scoped, tag = 'scoped memory for tpu_custom_call.1']
  %s0 = inlined_call_operand.hbm [shape: f32[16,256], index: 0, kind: input, shape index: {}]
  %s1 = inlined_call_operand.hbm [shape: bf16[256,512], index: 1, kind: input, shape index: {}]
  %s2 = inlined_call_operand.vmem [shape: f32[1,512], index: 2, kind: input, shape index: {}]
  %s3 = inlined_call_operand.hbm [shape: bf16[512,256], index: 3, kind: input, shape index: {}]
  %s4 = inlined_call_operand.vmem [shape: f32[1,256], index: 4, kind: input, shape index: {}]
  %s5 = inlined_call_operand.vmem [shape: f32[1,256], index: 5, kind: input, shape index: {}]
  %s6 = inlined_call_operand.<no memory space> [shape: f32[1,1], index: 6, kind: input, shape index: {}]
  %s7 = inlined_call_operand.hbm [shape: f32[1,16], index: 7, kind: output, shape index: {}]
  %s8 = sld [smem:[#allocation0]]
  $region50: #{tpu_custom_call.1} parent=0
    _
  %s10 = ssub.s32 1, %s8
  %s11 = scalar_select 0, %s10, %s8
  %v12 = vstv %s6
  %13 = vst [vmem:[#allocation2] sm:$0x1] %v12
  $region1: #{tpu_custom_call.1} parent=0
    #allocation3 [shape = 'u8[16384]{0}', space=vmem, size = 0x4000, scoped, tag = 'input window, operand 0, single buffered']
    #allocation4 [shape = 's32[1]{0}', space=sflag, size = 0x4, scoped, tag = 'scoped memory for tpu_custom_call.1']
    #allocation5 [shape = 's32[1]{0}', space=sflag, size = 0x4, scoped, tag = 'scoped memory for tpu_custom_call.1']
    #allocation6 [shape = 'u8[262144]{0}', space=vmem, size = 0x40000, scoped, tag = 'input window, operand 1, single buffered']
    #allocation7 [shape = 's32[1]{0}', space=sflag, size = 0x4, scoped, tag = 'scoped memory for tpu_custom_call.1']
    #allocation8 [shape = 'u8[262144]{0}', space=vmem, size = 0x40000, scoped, tag = 'input window, operand 3, single buffered']
    #allocation9 [shape = 'u8[512]{0}', space=vmem, size = 0x400, scoped, tag = 'output window, operand 0, single buffered']
    %14 = vsyncpa [#allocation4], 0
    %15 = vsyncpa [#allocation7], 0
    %16 = vsyncpa [#allocation5], 0
    // Predicated region
    $region2: #{tpu_custom_call.1} parent=1 // pred_check
      _
    $region3: #{tpu_custom_call.1} parent=1 // pred_check_branch
      %18 = sbr.rel (0) target = $region5
    $region4: #{tpu_custom_call.1} parent=1 // pred_region
      %s20 = ssub.s32 512, 512
      %21 = vsyncadd [#allocation4], %s20
      %s22 = sshll.u32 [#allocation3], 4
      %s23 = int_to_ptr.vmem [resolvable:$true] %s22
      %28 = dma.hbm_to_vmem [thread:$0]  %s0, 512, %s23, [#allocation4], 256, 256, 16
    $region5: #{tpu_custom_call.1} parent=1 // pred_fallthru
      _
    // Predicated region
    $region6: #{tpu_custom_call.1} parent=1 // pred_check
      _
    $region7: #{tpu_custom_call.1} parent=1 // pred_check_branch
      %30 = sbr.rel (0) target = $region9
    $region8: #{tpu_custom_call.1} parent=1 // pred_region
      %s32 = ssub.s32 8192, 8192
      %33 = vsyncadd [#allocation7], %s32
      %s34 = sshll.u32 [#allocation6], 4
      %s35 = int_to_ptr.vmem [resolvable:$true] %s34
      %40 = dma.hbm_to_vmem [thread:$0]  %s1, 8192, %s35, [#allocation7], 256, 256, 16
    $region9: #{tpu_custom_call.1} parent=1 // pred_fallthru
      _
    // Predicated region
    $region10: #{tpu_custom_call.1} parent=1 // pred_check
      _
    $region11: #{tpu_custom_call.1} parent=1 // pred_check_branch
      %42 = sbr.rel (0) target = $region13
    $region12: #{tpu_custom_call.1} parent=1 // pred_region
      _
    $region13: #{tpu_custom_call.1} parent=1 // pred_fallthru
      _
    // Predicated region
    $region14: #{tpu_custom_call.1} parent=1 // pred_check
      _
    $region15: #{tpu_custom_call.1} parent=1 // pred_check_branch
      %44 = sbr.rel (0) target = $region17
    $region16: #{tpu_custom_call.1} parent=1 // pred_region
      %s46 = ssub.s32 8192, 8192
      %47 = vsyncadd [#allocation7], %s46
      %s48 = sshll.u32 [#allocation8], 4
      %s49 = int_to_ptr.vmem [resolvable:$true] %s48
      %54 = dma.hbm_to_vmem [thread:$0]  %s3, 8192, %s49, [#allocation7], 128, 128, 8
    $region17: #{tpu_custom_call.1} parent=1 // pred_fallthru
      _
    // Predicated region
    $region18: #{tpu_custom_call.1} parent=1 // pred_check
      _
    $region19: #{tpu_custom_call.1} parent=1 // pred_check_branch
      %56 = sbr.rel (0) target = $region21
    $region20: #{tpu_custom_call.1} parent=1 // pred_region
      _
    $region21: #{tpu_custom_call.1} parent=1 // pred_fallthru
      _
    // Predicated region
    $region22: #{tpu_custom_call.1} parent=1 // pred_check
      _
    $region23: #{tpu_custom_call.1} parent=1 // pred_check_branch
      %58 = sbr.rel (0) target = $region25
    $region24: #{tpu_custom_call.1} parent=1 // pred_region
      _
    $region25: #{tpu_custom_call.1} parent=1 // pred_fallthru
      _
    // Predicated region
    $region26: #{tpu_custom_call.1} parent=1 // pred_check
      _
    $region27: #{tpu_custom_call.1} parent=1 // pred_check_branch
      %60 = sbr.rel (0) target = $region29
    $region28: #{tpu_custom_call.1} parent=1 // pred_region
      _
    $region29: #{tpu_custom_call.1} parent=1 // pred_fallthru
      _
    // Predicated region
    $region30: #{tpu_custom_call.1} parent=1 // pred_check
      _
    $region31: #{tpu_custom_call.1} parent=1 // pred_check_branch
      %62 = sbr.rel (0) target = $region33
    $region32: #{tpu_custom_call.1} parent=1 // pred_region
      %63 = dma.done [#allocation4], 512
    $region33: #{tpu_custom_call.1} parent=1 // pred_fallthru
      _
    // Predicated region
    $region34: #{tpu_custom_call.1} parent=1 // pred_check
      _
    $region35: #{tpu_custom_call.1} parent=1 // pred_check_branch
      %65 = sbr.rel (0) target = $region37
    $region36: #{tpu_custom_call.1} parent=1 // pred_region
      %66 = dma.done [#allocation7], 8192
    $region37: #{tpu_custom_call.1} parent=1 // pred_fallthru
      _
    // Predicated region
    $region38: #{tpu_custom_call.1} parent=1 // pred_check
      _
    $region39: #{tpu_custom_call.1} parent=1 // pred_check_branch
      %68 = sbr.rel (0) target = $region41
    $region40: #{tpu_custom_call.1} parent=1 // pred_region
      %69 = dma.done [#allocation7], 8192
    $region41: #{tpu_custom_call.1} parent=1 // pred_fallthru
      _
    %v70 = vld [vmem:[#allocation3] sm:$0xff]
    %v71 = vld [vmem:[#allocation3 + $0x8] sm:$0xff]
    %v72 = vld [vmem:[#allocation3 + $0x10] sm:$0xff]
    %v73 = vld [vmem:[#allocation3 + $0x18] sm:$0xff]
    %v74 = vpack.c.bf16 %v72, %v70
    %v75 = vpack.c.bf16 %v73, %v71
    %v76 = vld [vmem:[#allocation6] sm:$0xff]
    %v77 = vld [vmem:[#allocation6 + $0x8] sm:$0xff]
    %v78 = vld [vmem:[#allocation6 + $0x10] sm:$0xff]
    %v79 = vld [vmem:[#allocation6 + $0x18] sm:$0xff]
    %v80 = vld [vmem:[#allocation6 + $0x20] sm:$0xff]
    %v81 = vld [vmem:[#allocation6 + $0x28] sm:$0xff]
    %v82 = vld [vmem:[#allocation6 + $0x30] sm:$0xff]
    %v83 = vld [vmem:[#allocation6 + $0x38] sm:$0xff]
    %v84 = vld [vmem:[#allocation6 + $0x40] sm:$0xff]
    %v85 = vld [vmem:[#allocation6 + $0x48] sm:$0xff]
    %v86 = vld [vmem:[#allocation6 + $0x50] sm:$0xff]
    %v87 = vld [vmem:[#allocation6 + $0x58] sm:$0xff]
    %v88 = vld [vmem:[#allocation6 + $0x60] sm:$0xff]
    %v89 = vld [vmem:[#allocation6 + $0x68] sm:$0xff]
    %v90 = vld [vmem:[#allocation6 + $0x70] sm:$0xff]
    %v91 = vld [vmem:[#allocation6 + $0x78] sm:$0xff]
    %v92 = vld [vmem:[#allocation6 + $0x80] sm:$0xff]
    %v93 = vld [vmem:[#allocation6 + $0x88] sm:$0xff]
    %v94 = vld [vmem:[#allocation6 + $0x90] sm:$0xff]
    %v95 = vld [vmem:[#allocation6 + $0x98] sm:$0xff]
    %v96 = vld [vmem:[#allocation6 + $0xa0] sm:$0xff]
    %v97 = vld [vmem:[#allocation6 + $0xa8] sm:$0xff]
    %v98 = vld [vmem:[#allocation6 + $0xb0] sm:$0xff]
    %v99 = vld [vmem:[#allocation6 + $0xb8] sm:$0xff]
    %v100 = vld [vmem:[#allocation6 + $0xc0] sm:$0xff]
    %v101 = vld [vmem:[#allocation6 + $0xc8] sm:$0xff]
    %v102 = vld [vmem:[#allocation6 + $0xd0] sm:$0xff]
    %v103 = vld [vmem:[#allocation6 + $0xd8] sm:$0xff]
    %v104 = vld [vmem:[#allocation6 + $0xe0] sm:$0xff]
    %v105 = vld [vmem:[#allocation6 + $0xe8] sm:$0xff]
    %v106 = vld [vmem:[#allocation6 + $0xf0] sm:$0xff]
    %v107 = vld [vmem:[#allocation6 + $0xf8] sm:$0xff]
    %v108 = vld [vmem:[#allocation6 + $0x100] sm:$0xff]
    %v109 = vld [vmem:[#allocation6 + $0x108] sm:$0xff]
    %v110 = vld [vmem:[#allocation6 + $0x110] sm:$0xff]
    %v111 = vld [vmem:[#allocation6 + $0x118] sm:$0xff]
    %v112 = vld [vmem:[#allocation6 + $0x120] sm:$0xff]
    %v113 = vld [vmem:[#allocation6 + $0x128] sm:$0xff]
    %v114 = vld [vmem:[#allocation6 + $0x130] sm:$0xff]
    %v115 = vld [vmem:[#allocation6 + $0x138] sm:$0xff]
    %v116 = vld [vmem:[#allocation6 + $0x140] sm:$0xff]
    %v117 = vld [vmem:[#allocation6 + $0x148] sm:$0xff]
    %v118 = vld [vmem:[#allocation6 + $0x150] sm:$0xff]
    %v119 = vld [vmem:[#allocation6 + $0x158] sm:$0xff]
    %v120 = vld [vmem:[#allocation6 + $0x160] sm:$0xff]
    %v121 = vld [vmem:[#allocation6 + $0x168] sm:$0xff]
    %v122 = vld [vmem:[#allocation6 + $0x170] sm:$0xff]
    %v123 = vld [vmem:[#allocation6 + $0x178] sm:$0xff]
    %v124 = vld [vmem:[#allocation6 + $0x180] sm:$0xff]
    %v125 = vld [vmem:[#allocation6 + $0x188] sm:$0xff]
    %v126 = vld [vmem:[#allocation6 + $0x190] sm:$0xff]
    %v127 = vld [vmem:[#allocation6 + $0x198] sm:$0xff]
    %v128 = vld [vmem:[#allocation6 + $0x1a0] sm:$0xff]
    %v129 = vld [vmem:[#allocation6 + $0x1a8] sm:$0xff]
    %v130 = vld [vmem:[#allocation6 + $0x1b0] sm:$0xff]
    %v131 = vld [vmem:[#allocation6 + $0x1b8] sm:$0xff]
    %v132 = vld [vmem:[#allocation6 + $0x1c0] sm:$0xff]
    %v133 = vld [vmem:[#allocation6 + $0x1c8] sm:$0xff]
    %v134 = vld [vmem:[#allocation6 + $0x1d0] sm:$0xff]
    %v135 = vld [vmem:[#allocation6 + $0x1d8] sm:$0xff]
    %v136 = vld [vmem:[#allocation6 + $0x1e0] sm:$0xff]
    %v137 = vld [vmem:[#allocation6 + $0x1e8] sm:$0xff]
    %v138 = vld [vmem:[#allocation6 + $0x1f0] sm:$0xff]
    %v139 = vld [vmem:[#allocation6 + $0x1f8] sm:$0xff]
    %v140 = vld [vmem:[%s2] sm:$0xf]
    %v142 = vlaneseq
    %v143 = vshrl.u32 %v142, 7
    %v144 = vsub.s32 0, %v143
    %v145 = vrot.slane %v140, %v144
    %v146 = vlaneseq
    %v147 = vshrl.u32 %v146, 7
    %v148 = vsub.s32 1, %v147
    %v149 = vrot.slane %v140, %v148
    %v150 = vlaneseq
    %v151 = vshrl.u32 %v150, 7
    %v152 = vsub.s32 2, %v151
    %v153 = vrot.slane %v140, %v152
    %v154 = vlaneseq
    %v155 = vshrl.u32 %v154, 7
    %v156 = vsub.s32 3, %v155
    %v157 = vrot.slane %v140, %v156
    %v226 = vunpack.c.l.b16 %v76
    %v227 = vunpack.c.h.b16 %v76
    %v228 = vunpack.c.l.b16 %v77
    %v229 = vunpack.c.h.b16 %v77
    %v230 = vunpack.c.l.b16 %v78
    %v231 = vunpack.c.h.b16 %v78
    %v232 = vunpack.c.l.b16 %v79
    %v233 = vunpack.c.h.b16 %v79
    %v234 = vunpack.c.l.b16 %v80
    %v235 = vunpack.c.h.b16 %v80
    %v236 = vunpack.c.l.b16 %v81
    %v237 = vunpack.c.h.b16 %v81
    %v238 = vunpack.c.l.b16 %v82
    %v239 = vunpack.c.h.b16 %v82
    %v240 = vunpack.c.l.b16 %v83
    %v241 = vunpack.c.h.b16 %v83
    %v242 = vunpack.c.l.b16 %v84
    %v243 = vunpack.c.h.b16 %v84
    %v244 = vunpack.c.l.b16 %v85
    %v245 = vunpack.c.h.b16 %v85
    %v246 = vunpack.c.l.b16 %v86
    %v247 = vunpack.c.h.b16 %v86
    %v248 = vunpack.c.l.b16 %v87
    %v249 = vunpack.c.h.b16 %v87
    %v250 = vunpack.c.l.b16 %v88
    %v251 = vunpack.c.h.b16 %v88
    %v252 = vunpack.c.l.b16 %v89
    %v253 = vunpack.c.h.b16 %v89
    %v254 = vunpack.c.l.b16 %v90
    %v255 = vunpack.c.h.b16 %v90
    %v256 = vunpack.c.l.b16 %v91
    %v257 = vunpack.c.h.b16 %v91
    %v258 = vunpack.c.l.b16 %v92
    %v259 = vunpack.c.h.b16 %v92
    %v260 = vunpack.c.l.b16 %v93
    %v261 = vunpack.c.h.b16 %v93
    %v262 = vunpack.c.l.b16 %v94
    %v263 = vunpack.c.h.b16 %v94
    %v264 = vunpack.c.l.b16 %v95
    %v265 = vunpack.c.h.b16 %v95
    %v266 = vunpack.c.l.b16 %v96
    %v267 = vunpack.c.h.b16 %v96
    %v268 = vunpack.c.l.b16 %v97
    %v269 = vunpack.c.h.b16 %v97
    %v270 = vunpack.c.l.b16 %v98
    %v271 = vunpack.c.h.b16 %v98
    %v272 = vunpack.c.l.b16 %v99
    %v273 = vunpack.c.h.b16 %v99
    %v274 = vunpack.c.l.b16 %v100
    %v275 = vunpack.c.h.b16 %v100
    %v276 = vunpack.c.l.b16 %v101
    %v277 = vunpack.c.h.b16 %v101
    %v278 = vunpack.c.l.b16 %v102
    %v279 = vunpack.c.h.b16 %v102
    %v280 = vunpack.c.l.b16 %v103
    %v281 = vunpack.c.h.b16 %v103
    %v282 = vunpack.c.l.b16 %v104
    %v283 = vunpack.c.h.b16 %v104
    %v284 = vunpack.c.l.b16 %v105
    %v285 = vunpack.c.h.b16 %v105
    %v286 = vunpack.c.l.b16 %v106
    %v287 = vunpack.c.h.b16 %v106
    %v288 = vunpack.c.l.b16 %v107
    %v289 = vunpack.c.h.b16 %v107
    %v290 = vunpack.c.l.b16 %v108
    %v291 = vunpack.c.h.b16 %v108
    %v292 = vunpack.c.l.b16 %v109
    %v293 = vunpack.c.h.b16 %v109
    %v294 = vunpack.c.l.b16 %v110
    %v295 = vunpack.c.h.b16 %v110
    %v296 = vunpack.c.l.b16 %v111
    %v297 = vunpack.c.h.b16 %v111
    %v298 = vunpack.c.l.b16 %v112
    %v299 = vunpack.c.h.b16 %v112
    %v300 = vunpack.c.l.b16 %v113
    %v301 = vunpack.c.h.b16 %v113
    %v302 = vunpack.c.l.b16 %v114
    %v303 = vunpack.c.h.b16 %v114
    %v304 = vunpack.c.l.b16 %v115
    %v305 = vunpack.c.h.b16 %v115
    %v306 = vunpack.c.l.b16 %v116
    %v307 = vunpack.c.h.b16 %v116
    %v308 = vunpack.c.l.b16 %v117
    %v309 = vunpack.c.h.b16 %v117
    %v310 = vunpack.c.l.b16 %v118
    %v311 = vunpack.c.h.b16 %v118
    %v312 = vunpack.c.l.b16 %v119
    %v313 = vunpack.c.h.b16 %v119
    %v314 = vunpack.c.l.b16 %v120
    %v315 = vunpack.c.h.b16 %v120
    %v316 = vunpack.c.l.b16 %v121
    %v317 = vunpack.c.h.b16 %v121
    %v318 = vunpack.c.l.b16 %v122
    %v319 = vunpack.c.h.b16 %v122
    %v320 = vunpack.c.l.b16 %v123
    %v321 = vunpack.c.h.b16 %v123
    %v322 = vunpack.c.l.b16 %v124
    %v323 = vunpack.c.h.b16 %v124
    %v324 = vunpack.c.l.b16 %v125
    %v325 = vunpack.c.h.b16 %v125
    %v326 = vunpack.c.l.b16 %v126
    %v327 = vunpack.c.h.b16 %v126
    %v328 = vunpack.c.l.b16 %v127
    %v329 = vunpack.c.h.b16 %v127
    %v330 = vunpack.c.l.b16 %v128
    %v331 = vunpack.c.h.b16 %v128
    %v332 = vunpack.c.l.b16 %v129
    %v333 = vunpack.c.h.b16 %v129
    %v334 = vunpack.c.l.b16 %v130
    %v335 = vunpack.c.h.b16 %v130
    %v336 = vunpack.c.l.b16 %v131
    %v337 = vunpack.c.h.b16 %v131
    %v338 = vunpack.c.l.b16 %v132
    %v339 = vunpack.c.h.b16 %v132
    %v340 = vunpack.c.l.b16 %v133
    %v341 = vunpack.c.h.b16 %v133
    %v342 = vunpack.c.l.b16 %v134
    %v343 = vunpack.c.h.b16 %v134
    %v344 = vunpack.c.l.b16 %v135
    %v345 = vunpack.c.h.b16 %v135
    %v346 = vunpack.c.l.b16 %v136
    %v347 = vunpack.c.h.b16 %v136
    %v348 = vunpack.c.l.b16 %v137
    %v349 = vunpack.c.h.b16 %v137
    %v350 = vunpack.c.l.b16 %v138
    %v351 = vunpack.c.h.b16 %v138
    %v352 = vunpack.c.l.b16 %v139
    %v353 = vunpack.c.h.b16 %v139
    %v354 = vpack.c.b16 %v230, %v226
    %v355 = vpack.c.b16 %v231, %v227
    %v356 = vpack.c.b16 %v232, %v228
    %v357 = vpack.c.b16 %v233, %v229
    %v358 = vpack.c.b16 %v238, %v234
    %v359 = vpack.c.b16 %v239, %v235
    %v360 = vpack.c.b16 %v240, %v236
    %v361 = vpack.c.b16 %v241, %v237
    %v362 = vpack.c.b16 %v246, %v242
    %v363 = vpack.c.b16 %v247, %v243
    %v364 = vpack.c.b16 %v248, %v244
    %v365 = vpack.c.b16 %v249, %v245
    %v366 = vpack.c.b16 %v254, %v250
    %v367 = vpack.c.b16 %v255, %v251
    %v368 = vpack.c.b16 %v256, %v252
    %v369 = vpack.c.b16 %v257, %v253
    %v370 = vpack.c.b16 %v262, %v258
    %v371 = vpack.c.b16 %v263, %v259
    %v372 = vpack.c.b16 %v264, %v260
    %v373 = vpack.c.b16 %v265, %v261
    %v374 = vpack.c.b16 %v270, %v266
    %v375 = vpack.c.b16 %v271, %v267
    %v376 = vpack.c.b16 %v272, %v268
    %v377 = vpack.c.b16 %v273, %v269
    %v378 = vpack.c.b16 %v278, %v274
    %v379 = vpack.c.b16 %v279, %v275
    %v380 = vpack.c.b16 %v280, %v276
    %v381 = vpack.c.b16 %v281, %v277
    %v382 = vpack.c.b16 %v286, %v282
    %v383 = vpack.c.b16 %v287, %v283
    %v384 = vpack.c.b16 %v288, %v284
    %v385 = vpack.c.b16 %v289, %v285
    %v386 = vpack.c.b16 %v294, %v290
    %v387 = vpack.c.b16 %v295, %v291
    %v388 = vpack.c.b16 %v296, %v292
    %v389 = vpack.c.b16 %v297, %v293
    %v390 = vpack.c.b16 %v302, %v298
    %v391 = vpack.c.b16 %v303, %v299
    %v392 = vpack.c.b16 %v304, %v300
    %v393 = vpack.c.b16 %v305, %v301
    %v394 = vpack.c.b16 %v310, %v306
    %v395 = vpack.c.b16 %v311, %v307
    %v396 = vpack.c.b16 %v312, %v308
    %v397 = vpack.c.b16 %v313, %v309
    %v398 = vpack.c.b16 %v318, %v314
    %v399 = vpack.c.b16 %v319, %v315
    %v400 = vpack.c.b16 %v320, %v316
    %v401 = vpack.c.b16 %v321, %v317
    %v402 = vpack.c.b16 %v326, %v322
    %v403 = vpack.c.b16 %v327, %v323
    %v404 = vpack.c.b16 %v328, %v324
    %v405 = vpack.c.b16 %v329, %v325
    %v406 = vpack.c.b16 %v334, %v330
    %v407 = vpack.c.b16 %v335, %v331
    %v408 = vpack.c.b16 %v336, %v332
    %v409 = vpack.c.b16 %v337, %v333
    %v410 = vpack.c.b16 %v342, %v338
    %v411 = vpack.c.b16 %v343, %v339
    %v412 = vpack.c.b16 %v344, %v340
    %v413 = vpack.c.b16 %v345, %v341
    %v414 = vpack.c.b16 %v350, %v346
    %v415 = vpack.c.b16 %v351, %v347
    %v416 = vpack.c.b16 %v352, %v348
    %v417 = vpack.c.b16 %v353, %v349
    %482 = vmatprep.subr.bf16.mxu0 %v383
    %483 = vmatpush1.bf16.msra.mxu0 %v382
    %484 = vmatprep.subr.bf16.mxu0 %v379
    %485 = vmatpush1.bf16.msra.mxu0 %v378
    %486 = vmatprep.subr.bf16.mxu0 %v375
    %487 = vmatpush1.bf16.msra.mxu0 %v374
    %488 = vmatprep.subr.bf16.mxu0 %v371
    %489 = vmatpush1.bf16.msra.mxu0 %v370
    %490 = vmatprep.subr.bf16.mxu0 %v367
    %491 = vmatpush1.bf16.msra.mxu0 %v366
    %492 = vmatprep.subr.bf16.mxu0 %v363
    %493 = vmatpush1.bf16.msra.mxu0 %v362
    %494 = vmatprep.subr.bf16.mxu0 %v359
    %495 = vmatpush1.bf16.msra.mxu0 %v358
    %496 = vmatprep.subr.bf16.mxu0 %v355
    %497 = vmatpush1.bf16.msra.mxu0 %v354
    %498 = vmatprep.subr.bf16.mxu0 %v415
    %499 = vmatpush2.bf16.msra.mxu0 %v414
    %500 = vmatprep.subr.bf16.mxu0 %v411
    %501 = vmatpush2.bf16.msra.mxu0 %v410
    %502 = vmatprep.subr.bf16.mxu0 %v407
    %503 = vmatpush2.bf16.msra.mxu0 %v406
    %504 = vmatprep.subr.bf16.mxu0 %v403
    %505 = vmatpush2.bf16.msra.mxu0 %v402
    %506 = vmatprep.subr.bf16.mxu0 %v399
    %507 = vmatpush2.bf16.msra.mxu0 %v398
    %508 = vmatprep.subr.bf16.mxu0 %v395
    %509 = vmatpush2.bf16.msra.mxu0 %v394
    %510 = vmatprep.subr.bf16.mxu0 %v391
    %511 = vmatpush2.bf16.msra.mxu0 %v390
    %512 = vmatprep.subr.bf16.mxu0 %v387
    %513 = vmatpush2.bf16.msra.mxu0 %v386
    %514 = vmatprep.mubr.bf16.mxu0 %v75
    %515 = vmatmul.mubr.bf16.gmra.mxu0 %v74
    %v516 = vpop.f32.mrf.mxu0
    %v517 = vadd.f32 %v145, %v516
    %v518 = vpop.f32.mrf.mxu0
    %v519 = vadd.f32 %v149, %v518
    %v520 = vpop.f32.mrf.mxu0
    %v521 = vadd.f32 %v145, %v520
    %v522 = vpop.f32.mrf.mxu0
    %v523 = vadd.f32 %v149, %v522
    %524 = vdwg.mxu0
    %525 = vmatprep.subr.bf16.mxu0 %v385
    %526 = vmatpush1.bf16.msra.mxu0 %v384
    %527 = vmatprep.subr.bf16.mxu0 %v381
    %528 = vmatpush1.bf16.msra.mxu0 %v380
    %529 = vmatprep.subr.bf16.mxu0 %v377
    %530 = vmatpush1.bf16.msra.mxu0 %v376
    %531 = vmatprep.subr.bf16.mxu0 %v373
    %532 = vmatpush1.bf16.msra.mxu0 %v372
    %533 = vmatprep.subr.bf16.mxu0 %v369
    %534 = vmatpush1.bf16.msra.mxu0 %v368
    %535 = vmatprep.subr.bf16.mxu0 %v365
    %536 = vmatpush1.bf16.msra.mxu0 %v364
    %537 = vmatprep.subr.bf16.mxu0 %v361
    %538 = vmatpush1.bf16.msra.mxu0 %v360
    %539 = vmatprep.subr.bf16.mxu0 %v357
    %540 = vmatpush1.bf16.msra.mxu0 %v356
    %541 = vmatprep.subr.bf16.mxu0 %v417
    %542 = vmatpush2.bf16.msra.mxu0 %v416
    %543 = vmatprep.subr.bf16.mxu0 %v413
    %544 = vmatpush2.bf16.msra.mxu0 %v412
    %545 = vmatprep.subr.bf16.mxu0 %v409
    %546 = vmatpush2.bf16.msra.mxu0 %v408
    %547 = vmatprep.subr.bf16.mxu0 %v405
    %548 = vmatpush2.bf16.msra.mxu0 %v404
    %549 = vmatprep.subr.bf16.mxu0 %v401
    %550 = vmatpush2.bf16.msra.mxu0 %v400
    %551 = vmatprep.subr.bf16.mxu0 %v397
    %552 = vmatpush2.bf16.msra.mxu0 %v396
    %553 = vmatprep.subr.bf16.mxu0 %v393
    %554 = vmatpush2.bf16.msra.mxu0 %v392
    %555 = vmatprep.subr.bf16.mxu0 %v389
    %556 = vmatpush2.bf16.msra.mxu0 %v388
    %557 = vmatprep.mubr.bf16.mxu0 %v75
    %558 = vmatmul.mubr.bf16.gmra.mxu0 %v74
    %v559 = vpop.f32.mrf.mxu0
    %v560 = vadd.f32 %v153, %v559
    %v561 = vpop.f32.mrf.mxu0
    %v562 = vadd.f32 %v157, %v561
    %v563 = vpop.f32.mrf.mxu0
    %v564 = vadd.f32 %v153, %v563
    %v565 = vpop.f32.mrf.mxu0
    %v566 = vadd.f32 %v157, %v565
    %567 = vdwg.mxu0
    %vm568 = vcmp.gt.f32.partialorder %v517, 0.0
    %vm569 = vcmp.gt.f32.partialorder %v519, 0.0
    %vm570 = vcmp.gt.f32.partialorder %v560, 0.0
    %vm571 = vcmp.gt.f32.partialorder %v562, 0.0
    %vm572 = vcmp.gt.f32.partialorder %v521, 0.0
    %vm573 = vcmp.gt.f32.partialorder %v523, 0.0
    %vm574 = vcmp.gt.f32.partialorder %v564, 0.0
    %vm575 = vcmp.gt.f32.partialorder %v566, 0.0
    %v576 = vmul.f32 %v517, 0.2
    %v577 = vmul.f32 %v519, 0.2
    %v578 = vmul.f32 %v560, 0.2
    %v579 = vmul.f32 %v562, 0.2
    %v580 = vmul.f32 %v521, 0.2
    %v581 = vmul.f32 %v523, 0.2
    %v582 = vmul.f32 %v564, 0.2
    %v583 = vmul.f32 %v566, 0.2
    %v584 = vsel %vm568, %v517, %v576
    %v585 = vsel %vm569, %v519, %v577
    %v586 = vsel %vm570, %v560, %v578
    %v587 = vsel %vm571, %v562, %v579
    %v588 = vsel %vm572, %v521, %v580
    %v589 = vsel %vm573, %v523, %v581
    %v590 = vsel %vm574, %v564, %v582
    %v591 = vsel %vm575, %v566, %v583
    %v592 = vpack.c.bf16 %v588, %v584
    %v593 = vpack.c.bf16 %v589, %v585
    %v594 = vpack.c.bf16 %v590, %v586
    %v595 = vpack.c.bf16 %v591, %v587
    %v596 = vld [vmem:[#allocation8] sm:$0xff]
    %v597 = vld [vmem:[#allocation8 + $0x8] sm:$0xff]
    %v598 = vld [vmem:[#allocation8 + $0x10] sm:$0xff]
    %v599 = vld [vmem:[#allocation8 + $0x18] sm:$0xff]
    %v600 = vld [vmem:[#allocation8 + $0x20] sm:$0xff]
    %v601 = vld [vmem:[#allocation8 + $0x28] sm:$0xff]
    %v602 = vld [vmem:[#allocation8 + $0x30] sm:$0xff]
    %v603 = vld [vmem:[#allocation8 + $0x38] sm:$0xff]
    %v604 = vld [vmem:[#allocation8 + $0x40] sm:$0xff]
    %v605 = vld [vmem:[#allocation8 + $0x48] sm:$0xff]
    %v606 = vld [vmem:[#allocation8 + $0x50] sm:$0xff]
    %v607 = vld [vmem:[#allocation8 + $0x58] sm:$0xff]
    %v608 = vld [vmem:[#allocation8 + $0x60] sm:$0xff]
    %v609 = vld [vmem:[#allocation8 + $0x68] sm:$0xff]
    %v610 = vld [vmem:[#allocation8 + $0x70] sm:$0xff]
    %v611 = vld [vmem:[#allocation8 + $0x78] sm:$0xff]
    %v612 = vld [vmem:[#allocation8 + $0x80] sm:$0xff]
    %v613 = vld [vmem:[#allocation8 + $0x88] sm:$0xff]
    %v614 = vld [vmem:[#allocation8 + $0x90] sm:$0xff]
    %v615 = vld [vmem:[#allocation8 + $0x98] sm:$0xff]
    %v616 = vld [vmem:[#allocation8 + $0xa0] sm:$0xff]
    %v617 = vld [vmem:[#allocation8 + $0xa8] sm:$0xff]
    %v618 = vld [vmem:[#allocation8 + $0xb0] sm:$0xff]
    %v619 = vld [vmem:[#allocation8 + $0xb8] sm:$0xff]
    %v620 = vld [vmem:[#allocation8 + $0xc0] sm:$0xff]
    %v621 = vld [vmem:[#allocation8 + $0xc8] sm:$0xff]
    %v622 = vld [vmem:[#allocation8 + $0xd0] sm:$0xff]
    %v623 = vld [vmem:[#allocation8 + $0xd8] sm:$0xff]
    %v624 = vld [vmem:[#allocation8 + $0xe0] sm:$0xff]
    %v625 = vld [vmem:[#allocation8 + $0xe8] sm:$0xff]
    %v626 = vld [vmem:[#allocation8 + $0xf0] sm:$0xff]
    %v627 = vld [vmem:[#allocation8 + $0xf8] sm:$0xff]
    %v628 = vld [vmem:[#allocation8 + $0x100] sm:$0xff]
    %v629 = vld [vmem:[#allocation8 + $0x108] sm:$0xff]
    %v630 = vld [vmem:[#allocation8 + $0x110] sm:$0xff]
    %v631 = vld [vmem:[#allocation8 + $0x118] sm:$0xff]
    %v632 = vld [vmem:[#allocation8 + $0x120] sm:$0xff]
    %v633 = vld [vmem:[#allocation8 + $0x128] sm:$0xff]
    %v634 = vld [vmem:[#allocation8 + $0x130] sm:$0xff]
    %v635 = vld [vmem:[#allocation8 + $0x138] sm:$0xff]
    %v636 = vld [vmem:[#allocation8 + $0x140] sm:$0xff]
    %v637 = vld [vmem:[#allocation8 + $0x148] sm:$0xff]
    %v638 = vld [vmem:[#allocation8 + $0x150] sm:$0xff]
    %v639 = vld [vmem:[#allocation8 + $0x158] sm:$0xff]
    %v640 = vld [vmem:[#allocation8 + $0x160] sm:$0xff]
    %v641 = vld [vmem:[#allocation8 + $0x168] sm:$0xff]
    %v642 = vld [vmem:[#allocation8 + $0x170] sm:$0xff]
    %v643 = vld [vmem:[#allocation8 + $0x178] sm:$0xff]
    %v644 = vld [vmem:[#allocation8 + $0x180] sm:$0xff]
    %v645 = vld [vmem:[#allocation8 + $0x188] sm:$0xff]
    %v646 = vld [vmem:[#allocation8 + $0x190] sm:$0xff]
    %v647 = vld [vmem:[#allocation8 + $0x198] sm:$0xff]
    %v648 = vld [vmem:[#allocation8 + $0x1a0] sm:$0xff]
    %v649 = vld [vmem:[#allocation8 + $0x1a8] sm:$0xff]
    %v650 = vld [vmem:[#allocation8 + $0x1b0] sm:$0xff]
    %v651 = vld [vmem:[#allocation8 + $0x1b8] sm:$0xff]
    %v652 = vld [vmem:[#allocation8 + $0x1c0] sm:$0xff]
    %v653 = vld [vmem:[#allocation8 + $0x1c8] sm:$0xff]
    %v654 = vld [vmem:[#allocation8 + $0x1d0] sm:$0xff]
    %v655 = vld [vmem:[#allocation8 + $0x1d8] sm:$0xff]
    %v656 = vld [vmem:[#allocation8 + $0x1e0] sm:$0xff]
    %v657 = vld [vmem:[#allocation8 + $0x1e8] sm:$0xff]
    %v658 = vld [vmem:[#allocation8 + $0x1f0] sm:$0xff]
    %v659 = vld [vmem:[#allocation8 + $0x1f8] sm:$0xff]
    %v660 = vld [vmem:[%s4] sm:$0x3]
    %v662 = vlaneseq
    %v663 = vshrl.u32 %v662, 7
    %v664 = vsub.s32 0, %v663
    %v665 = vrot.slane %v660, %v664
    %v666 = vlaneseq
    %v667 = vshrl.u32 %v666, 7
    %v668 = vsub.s32 1, %v667
    %v669 = vrot.slane %v660, %v668
    %v736 = vunpack.c.l.b16 %v596
    %v737 = vunpack.c.h.b16 %v596
    %v738 = vunpack.c.l.b16 %v597
    %v739 = vunpack.c.h.b16 %v597
    %v740 = vunpack.c.l.b16 %v598
    %v741 = vunpack.c.h.b16 %v598
    %v742 = vunpack.c.l.b16 %v599
    %v743 = vunpack.c.h.b16 %v599
    %v744 = vunpack.c.l.b16 %v600
    %v745 = vunpack.c.h.b16 %v600
    %v746 = vunpack.c.l.b16 %v601
    %v747 = vunpack.c.h.b16 %v601
    %v748 = vunpack.c.l.b16 %v602
    %v749 = vunpack.c.h.b16 %v602
    %v750 = vunpack.c.l.b16 %v603
    %v751 = vunpack.c.h.b16 %v603
    %v752 = vunpack.c.l.b16 %v604
    %v753 = vunpack.c.h.b16 %v604
    %v754 = vunpack.c.l.b16 %v605
    %v755 = vunpack.c.h.b16 %v605
    %v756 = vunpack.c.l.b16 %v606
    %v757 = vunpack.c.h.b16 %v606
    %v758 = vunpack.c.l.b16 %v607
    %v759 = vunpack.c.h.b16 %v607
    %v760 = vunpack.c.l.b16 %v608
    %v761 = vunpack.c.h.b16 %v608
    %v762 = vunpack.c.l.b16 %v609
    %v763 = vunpack.c.h.b16 %v609
    %v764 = vunpack.c.l.b16 %v610
    %v765 = vunpack.c.h.b16 %v610
    %v766 = vunpack.c.l.b16 %v611
    %v767 = vunpack.c.h.b16 %v611
    %v768 = vunpack.c.l.b16 %v612
    %v769 = vunpack.c.h.b16 %v612
    %v770 = vunpack.c.l.b16 %v613
    %v771 = vunpack.c.h.b16 %v613
    %v772 = vunpack.c.l.b16 %v614
    %v773 = vunpack.c.h.b16 %v614
    %v774 = vunpack.c.l.b16 %v615
    %v775 = vunpack.c.h.b16 %v615
    %v776 = vunpack.c.l.b16 %v616
    %v777 = vunpack.c.h.b16 %v616
    %v778 = vunpack.c.l.b16 %v617
    %v779 = vunpack.c.h.b16 %v617
    %v780 = vunpack.c.l.b16 %v618
    %v781 = vunpack.c.h.b16 %v618
    %v782 = vunpack.c.l.b16 %v619
    %v783 = vunpack.c.h.b16 %v619
    %v784 = vunpack.c.l.b16 %v620
    %v785 = vunpack.c.h.b16 %v620
    %v786 = vunpack.c.l.b16 %v621
    %v787 = vunpack.c.h.b16 %v621
    %v788 = vunpack.c.l.b16 %v622
    %v789 = vunpack.c.h.b16 %v622
    %v790 = vunpack.c.l.b16 %v623
    %v791 = vunpack.c.h.b16 %v623
    %v792 = vunpack.c.l.b16 %v624
    %v793 = vunpack.c.h.b16 %v624
    %v794 = vunpack.c.l.b16 %v625
    %v795 = vunpack.c.h.b16 %v625
    %v796 = vunpack.c.l.b16 %v626
    %v797 = vunpack.c.h.b16 %v626
    %v798 = vunpack.c.l.b16 %v627
    %v799 = vunpack.c.h.b16 %v627
    %v800 = vunpack.c.l.b16 %v628
    %v801 = vunpack.c.h.b16 %v628
    %v802 = vunpack.c.l.b16 %v629
    %v803 = vunpack.c.h.b16 %v629
    %v804 = vunpack.c.l.b16 %v630
    %v805 = vunpack.c.h.b16 %v630
    %v806 = vunpack.c.l.b16 %v631
    %v807 = vunpack.c.h.b16 %v631
    %v808 = vunpack.c.l.b16 %v632
    %v809 = vunpack.c.h.b16 %v632
    %v810 = vunpack.c.l.b16 %v633
    %v811 = vunpack.c.h.b16 %v633
    %v812 = vunpack.c.l.b16 %v634
    %v813 = vunpack.c.h.b16 %v634
    %v814 = vunpack.c.l.b16 %v635
    %v815 = vunpack.c.h.b16 %v635
    %v816 = vunpack.c.l.b16 %v636
    %v817 = vunpack.c.h.b16 %v636
    %v818 = vunpack.c.l.b16 %v637
    %v819 = vunpack.c.h.b16 %v637
    %v820 = vunpack.c.l.b16 %v638
    %v821 = vunpack.c.h.b16 %v638
    %v822 = vunpack.c.l.b16 %v639
    %v823 = vunpack.c.h.b16 %v639
    %v824 = vunpack.c.l.b16 %v640
    %v825 = vunpack.c.h.b16 %v640
    %v826 = vunpack.c.l.b16 %v641
    %v827 = vunpack.c.h.b16 %v641
    %v828 = vunpack.c.l.b16 %v642
    %v829 = vunpack.c.h.b16 %v642
    %v830 = vunpack.c.l.b16 %v643
    %v831 = vunpack.c.h.b16 %v643
    %v832 = vunpack.c.l.b16 %v644
    %v833 = vunpack.c.h.b16 %v644
    %v834 = vunpack.c.l.b16 %v645
    %v835 = vunpack.c.h.b16 %v645
    %v836 = vunpack.c.l.b16 %v646
    %v837 = vunpack.c.h.b16 %v646
    %v838 = vunpack.c.l.b16 %v647
    %v839 = vunpack.c.h.b16 %v647
    %v840 = vunpack.c.l.b16 %v648
    %v841 = vunpack.c.h.b16 %v648
    %v842 = vunpack.c.l.b16 %v649
    %v843 = vunpack.c.h.b16 %v649
    %v844 = vunpack.c.l.b16 %v650
    %v845 = vunpack.c.h.b16 %v650
    %v846 = vunpack.c.l.b16 %v651
    %v847 = vunpack.c.h.b16 %v651
    %v848 = vunpack.c.l.b16 %v652
    %v849 = vunpack.c.h.b16 %v652
    %v850 = vunpack.c.l.b16 %v653
    %v851 = vunpack.c.h.b16 %v653
    %v852 = vunpack.c.l.b16 %v654
    %v853 = vunpack.c.h.b16 %v654
    %v854 = vunpack.c.l.b16 %v655
    %v855 = vunpack.c.h.b16 %v655
    %v856 = vunpack.c.l.b16 %v656
    %v857 = vunpack.c.h.b16 %v656
    %v858 = vunpack.c.l.b16 %v657
    %v859 = vunpack.c.h.b16 %v657
    %v860 = vunpack.c.l.b16 %v658
    %v861 = vunpack.c.h.b16 %v658
    %v862 = vunpack.c.l.b16 %v659
    %v863 = vunpack.c.h.b16 %v659
    %v864 = vpack.c.b16 %v738, %v736
    %v865 = vpack.c.b16 %v739, %v737
    %v866 = vpack.c.b16 %v742, %v740
    %v867 = vpack.c.b16 %v743, %v741
    %v868 = vpack.c.b16 %v746, %v744
    %v869 = vpack.c.b16 %v747, %v745
    %v870 = vpack.c.b16 %v750, %v748
    %v871 = vpack.c.b16 %v751, %v749
    %v872 = vpack.c.b16 %v754, %v752
    %v873 = vpack.c.b16 %v755, %v753
    %v874 = vpack.c.b16 %v758, %v756
    %v875 = vpack.c.b16 %v759, %v757
    %v876 = vpack.c.b16 %v762, %v760
    %v877 = vpack.c.b16 %v763, %v761
    %v878 = vpack.c.b16 %v766, %v764
    %v879 = vpack.c.b16 %v767, %v765
    %v880 = vpack.c.b16 %v770, %v768
    %v881 = vpack.c.b16 %v771, %v769
    %v882 = vpack.c.b16 %v774, %v772
    %v883 = vpack.c.b16 %v775, %v773
    %v884 = vpack.c.b16 %v778, %v776
    %v885 = vpack.c.b16 %v779, %v777
    %v886 = vpack.c.b16 %v782, %v780
    %v887 = vpack.c.b16 %v783, %v781
    %v888 = vpack.c.b16 %v786, %v784
    %v889 = vpack.c.b16 %v787, %v785
    %v890 = vpack.c.b16 %v790, %v788
    %v891 = vpack.c.b16 %v791, %v789
    %v892 = vpack.c.b16 %v794, %v792
    %v893 = vpack.c.b16 %v795, %v793
    %v894 = vpack.c.b16 %v798, %v796
    %v895 = vpack.c.b16 %v799, %v797
    %v896 = vpack.c.b16 %v802, %v800
    %v897 = vpack.c.b16 %v803, %v801
    %v898 = vpack.c.b16 %v806, %v804
    %v899 = vpack.c.b16 %v807, %v805
    %v900 = vpack.c.b16 %v810, %v808
    %v901 = vpack.c.b16 %v811, %v809
    %v902 = vpack.c.b16 %v814, %v812
    %v903 = vpack.c.b16 %v815, %v813
    %v904 = vpack.c.b16 %v818, %v816
    %v905 = vpack.c.b16 %v819, %v817
    %v906 = vpack.c.b16 %v822, %v820
    %v907 = vpack.c.b16 %v823, %v821
    %v908 = vpack.c.b16 %v826, %v824
    %v909 = vpack.c.b16 %v827, %v825
    %v910 = vpack.c.b16 %v830, %v828
    %v911 = vpack.c.b16 %v831, %v829
    %v912 = vpack.c.b16 %v834, %v832
    %v913 = vpack.c.b16 %v835, %v833
    %v914 = vpack.c.b16 %v838, %v836
    %v915 = vpack.c.b16 %v839, %v837
    %v916 = vpack.c.b16 %v842, %v840
    %v917 = vpack.c.b16 %v843, %v841
    %v918 = vpack.c.b16 %v846, %v844
    %v919 = vpack.c.b16 %v847, %v845
    %v920 = vpack.c.b16 %v850, %v848
    %v921 = vpack.c.b16 %v851, %v849
    %v922 = vpack.c.b16 %v854, %v852
    %v923 = vpack.c.b16 %v855, %v853
    %v924 = vpack.c.b16 %v858, %v856
    %v925 = vpack.c.b16 %v859, %v857
    %v926 = vpack.c.b16 %v862, %v860
    %v927 = vpack.c.b16 %v863, %v861
    %992 = vmatprep.subr.bf16.mxu0 %v879
    %993 = vmatpush1.bf16.msra.mxu0 %v878
    %994 = vmatprep.subr.bf16.mxu0 %v877
    %995 = vmatpush1.bf16.msra.mxu0 %v876
    %996 = vmatprep.subr.bf16.mxu0 %v875
    %997 = vmatpush1.bf16.msra.mxu0 %v874
    %998 = vmatprep.subr.bf16.mxu0 %v873
    %999 = vmatpush1.bf16.msra.mxu0 %v872
    %1000 = vmatprep.subr.bf16.mxu0 %v871
    %1001 = vmatpush1.bf16.msra.mxu0 %v870
    %1002 = vmatprep.subr.bf16.mxu0 %v869
    %1003 = vmatpush1.bf16.msra.mxu0 %v868
    %1004 = vmatprep.subr.bf16.mxu0 %v867
    %1005 = vmatpush1.bf16.msra.mxu0 %v866
    %1006 = vmatprep.subr.bf16.mxu0 %v865
    %1007 = vmatpush1.bf16.msra.mxu0 %v864
    %1008 = vmatprep.subr.bf16.mxu0 %v895
    %1009 = vmatpush2.bf16.msra.mxu0 %v894
    %1010 = vmatprep.subr.bf16.mxu0 %v893
    %1011 = vmatpush2.bf16.msra.mxu0 %v892
    %1012 = vmatprep.subr.bf16.mxu0 %v891
    %1013 = vmatpush2.bf16.msra.mxu0 %v890
    %1014 = vmatprep.subr.bf16.mxu0 %v889
    %1015 = vmatpush2.bf16.msra.mxu0 %v888
    %1016 = vmatprep.subr.bf16.mxu0 %v887
    %1017 = vmatpush2.bf16.msra.mxu0 %v886
    %1018 = vmatprep.subr.bf16.mxu0 %v885
    %1019 = vmatpush2.bf16.msra.mxu0 %v884
    %1020 = vmatprep.subr.bf16.mxu0 %v883
    %1021 = vmatpush2.bf16.msra.mxu0 %v882
    %1022 = vmatprep.subr.bf16.mxu0 %v881
    %1023 = vmatpush2.bf16.msra.mxu0 %v880
    %1024 = vmatprep.mubr.bf16.mxu0 %v593
    %1025 = vmatmul.mubr.bf16.gmra.mxu0 %v592
    %v1026 = vpop.f32.mrf.mxu0
    %v1027 = vadd.f32 %v665, %v1026
    %v1028 = vpop.f32.mrf.mxu0
    %v1029 = vadd.f32 %v669, %v1028
    %v1030 = vpop.f32.mrf.mxu0
    %v1031 = vadd.f32 %v665, %v1030
    %v1032 = vpop.f32.mrf.mxu0
    %v1033 = vadd.f32 %v669, %v1032
    %1034 = vdwg.mxu0
    %1035 = vmatprep.subr.bf16.mxu0 %v911
    %1036 = vmatpush1.bf16.msra.mxu0 %v910
    %1037 = vmatprep.subr.bf16.mxu0 %v909
    %1038 = vmatpush1.bf16.msra.mxu0 %v908
    %1039 = vmatprep.subr.bf16.mxu0 %v907
    %1040 = vmatpush1.bf16.msra.mxu0 %v906
    %1041 = vmatprep.subr.bf16.mxu0 %v905
    %1042 = vmatpush1.bf16.msra.mxu0 %v904
    %1043 = vmatprep.subr.bf16.mxu0 %v903
    %1044 = vmatpush1.bf16.msra.mxu0 %v902
    %1045 = vmatprep.subr.bf16.mxu0 %v901
    %1046 = vmatpush1.bf16.msra.mxu0 %v900
    %1047 = vmatprep.subr.bf16.mxu0 %v899
    %1048 = vmatpush1.bf16.msra.mxu0 %v898
    %1049 = vmatprep.subr.bf16.mxu0 %v897
    %1050 = vmatpush1.bf16.msra.mxu0 %v896
    %1051 = vmatprep.subr.bf16.mxu0 %v927
    %1052 = vmatpush2.bf16.msra.mxu0 %v926
    %1053 = vmatprep.subr.bf16.mxu0 %v925
    %1054 = vmatpush2.bf16.msra.mxu0 %v924
    %1055 = vmatprep.subr.bf16.mxu0 %v923
    %1056 = vmatpush2.bf16.msra.mxu0 %v922
    %1057 = vmatprep.subr.bf16.mxu0 %v921
    %1058 = vmatpush2.bf16.msra.mxu0 %v920
    %1059 = vmatprep.subr.bf16.mxu0 %v919
    %1060 = vmatpush2.bf16.msra.mxu0 %v918
    %1061 = vmatprep.subr.bf16.mxu0 %v917
    %1062 = vmatpush2.bf16.msra.mxu0 %v916
    %1063 = vmatprep.subr.bf16.mxu0 %v915
    %1064 = vmatpush2.bf16.msra.mxu0 %v914
    %1065 = vmatprep.subr.bf16.mxu0 %v913
    %1066 = vmatpush2.bf16.msra.mxu0 %v912
    %1067 = vmatprep.mubr.bf16.mxu0 %v595
    %1068 = vmatmul.mubr.bf16.gmra.mxu0 %v594
    %v1069 = vpop.f32.mrf.mxu0
    %v1070 = vadd.f32 %v1027, %v1069
    %v1071 = vpop.f32.mrf.mxu0
    %v1072 = vadd.f32 %v1029, %v1071
    %v1073 = vpop.f32.mrf.mxu0
    %v1074 = vadd.f32 %v1031, %v1073
    %v1075 = vpop.f32.mrf.mxu0
    %v1076 = vadd.f32 %v1033, %v1075
    %1077 = vdwg.mxu0
    %vm1078 = vcmp.gt.f32.partialorder %v1070, 0.0
    %vm1079 = vcmp.gt.f32.partialorder %v1072, 0.0
    %vm1080 = vcmp.gt.f32.partialorder %v1074, 0.0
    %vm1081 = vcmp.gt.f32.partialorder %v1076, 0.0
    %v1082 = vmul.f32 %v1070, 0.2
    %v1083 = vmul.f32 %v1072, 0.2
    %v1084 = vmul.f32 %v1074, 0.2
    %v1085 = vmul.f32 %v1076, 0.2
    %v1086 = vsel %vm1078, %v1070, %v1082
    %v1087 = vsel %vm1079, %v1072, %v1083
    %v1088 = vsel %vm1080, %v1074, %v1084
    %v1089 = vsel %vm1081, %v1076, %v1085
    %v1090 = vld [vmem:[%s5] sm:$0x3]
    %v1091 = vld [vmem:[#allocation2] sm:$0x1]
    %1093 = vset.pattern.permute.xlu0 0
    %1094 = vperm.xlu0 %1093, %v1091
    %v1095 = vpop.permute.xlu0 %1094
    %v1097 = vlaneseq
    %v1098 = vshrl.u32 %v1097, 7
    %v1099 = vsub.s32 0, %v1098
    %v1100 = vrot.slane %v1095, %v1099
    %v1102 = vlaneseq
    %v1103 = vshrl.u32 %v1102, 7
    %v1104 = vsub.s32 0, %v1103
    %v1105 = vrot.slane %v1090, %v1104
    %v1106 = vlaneseq
    %v1107 = vshrl.u32 %v1106, 7
    %v1108 = vsub.s32 1, %v1107
    %v1109 = vrot.slane %v1090, %v1108
    %1112 = vmatprep.subr.mxu0 0.0
    %1113 = vmatpush1.xpose.msra.mxu0 0.0
    %1114 = vmatprep.subr.mxu0 0.0
    %1115 = vmatpush1.xpose.msra.mxu0 0.0
    %1116 = vmatprep.subr.mxu0 0.0
    %1117 = vmatpush1.xpose.msra.mxu0 0.0
    %1118 = vmatprep.subr.mxu0 0.0
    %1119 = vmatpush1.xpose.msra.mxu0 0.0
    %1120 = vmatprep.subr.mxu0 0.0
    %1121 = vmatpush1.xpose.msra.mxu0 0.0
    %1122 = vmatprep.subr.mxu0 0.0
    %1123 = vmatpush1.xpose.msra.mxu0 0.0
    %1124 = vmatprep.subr.mxu0 0.0
    %1125 = vmatpush1.xpose.msra.mxu0 0.0
    %1126 = vmatprep.subr.mxu0 0.0
    %1127 = vmatpush1.xpose.msra.mxu0 0.0
    %1128 = vmatprep.subr.mxu0 0.0
    %1129 = vmatpush1.xpose.msra.mxu0 0.0
    %1130 = vmatprep.subr.mxu0 0.0
    %1131 = vmatpush1.xpose.msra.mxu0 0.0
    %1132 = vmatprep.subr.mxu0 0.0
    %1133 = vmatpush1.xpose.msra.mxu0 0.0
    %1134 = vmatprep.subr.mxu0 0.0
    %1135 = vmatpush1.xpose.msra.mxu0 0.0
    %1136 = vmatprep.subr.mxu0 0.0
    %1137 = vmatpush1.xpose.msra.mxu0 0.0
    %1138 = vmatprep.subr.mxu0 0.0
    %1139 = vmatpush1.xpose.msra.mxu0 0.0
    %1140 = vmatprep.subr.mxu0 %v1089
    %1141 = vmatpush1.xpose.msra.mxu0 %v1088
    %1142 = vmatprep.subr.mxu0 %v1087
    %1143 = vmatpush1.xpose.msra.mxu0 %v1086
    %1144 = vmatprep.subr.mxu0 0.0
    %1145 = vmatpush2.xpose.msra.mxu0 0.0
    %1146 = vmatprep.subr.mxu0 0.0
    %1147 = vmatpush2.xpose.msra.mxu0 0.0
    %1148 = vmatprep.subr.mxu0 0.0
    %1149 = vmatpush2.xpose.msra.mxu0 0.0
    %1150 = vmatprep.subr.mxu0 0.0
    %1151 = vmatpush2.xpose.msra.mxu0 0.0
    %1152 = vmatprep.subr.mxu0 0.0
    %1153 = vmatpush2.xpose.msra.mxu0 0.0
    %1154 = vmatprep.subr.mxu0 0.0
    %1155 = vmatpush2.xpose.msra.mxu0 0.0
    %1156 = vmatprep.subr.mxu0 0.0
    %1157 = vmatpush2.xpose.msra.mxu0 0.0
    %1158 = vmatprep.subr.mxu0 0.0
    %1159 = vmatpush2.xpose.msra.mxu0 0.0
    %1160 = vmatprep.subr.mxu0 0.0
    %1161 = vmatpush2.xpose.msra.mxu0 0.0
    %1162 = vmatprep.subr.mxu0 0.0
    %1163 = vmatpush2.xpose.msra.mxu0 0.0
    %1164 = vmatprep.subr.mxu0 0.0
    %1165 = vmatpush2.xpose.msra.mxu0 0.0
    %1166 = vmatprep.subr.mxu0 0.0
    %1167 = vmatpush2.xpose.msra.mxu0 0.0
    %1168 = vmatprep.subr.mxu0 0.0
    %1169 = vmatpush2.xpose.msra.mxu0 0.0
    %1170 = vmatprep.subr.mxu0 0.0
    %1171 = vmatpush2.xpose.msra.mxu0 0.0
    %1172 = vmatprep.subr.mxu0 0.0
    %1173 = vmatpush2.xpose.msra.mxu0 0.0
    %1174 = vmatprep.subr.mxu0 0.0
    %1175 = vmatpush2.xpose.msra.mxu0 0.0
    %1176 = vmatprep.mubr.f32.mxu0 %v1109
    %1177 = vmatmul.mubr.f32.gmra.mxu0 %v1105
    %v1178 = vpop.f32.mrf.mxu0
    %v1179 = vadd.f32 %v1100, %v1178
    %v1180 = vpop.f32.mrf.mxu0
    %1181 = vdwg.mxu0
    %v1182 = vxor.u32 %v1179, 2147483648
    %v1183 = vmul.f32 %v1182, 1.442695
    %v1184 = vpow.pop %v1183
    %v1185 = vadd.f32 %v1184, 1.0
    %v1186 = vrcp.pop %v1185
    %v1187 = vmul.f32 1.0, %v1186
    %vm1188 = vcmask 122880
    %1189 = vst.msk [vmem:[#allocation9] sm:$0x1] %vm1188, %v1187
    // Predicated region
    $region42: #{tpu_custom_call.1} parent=1 // pred_check
      _
    $region43: #{tpu_custom_call.1} parent=1 // pred_check_branch
      %1191 = sbr.rel (0) target = $region45
    $region44: #{tpu_custom_call.1} parent=1 // pred_region
      %s1193 = ssub.s32 16, 16
      %1194 = vsyncadd [#allocation5], %s1193
      %s1196 = sshll.u32 [#allocation9], 4
      %s1197 = int_to_ptr.vmem [resolvable:$true] %s1196
      %1199 = dma.vmem_to_hbm [thread:$0]  %s1197, 16, %s7, [#allocation5]
    $region45: #{tpu_custom_call.1} parent=1 // pred_fallthru
      _
    // Predicated region
    $region46: #{tpu_custom_call.1} parent=1 // pred_check
      _
    $region47: #{tpu_custom_call.1} parent=1 // pred_check_branch
      %1201 = sbr.rel (0) target = $region49
    $region48: #{tpu_custom_call.1} parent=1 // pred_region
      %1202 = dma.done [#allocation5], 16
    $region49: #{tpu_custom_call.1} parent=1 // pred_fallthru
      _
    %1203 = vsyncpa [#allocation4], 1
    %1204 = vsyncpa [#allocation7], 1
    %1205 = vsyncpa [#allocation5], 1

</llo_original>
